<compile_context>
chip_gen: v6e
topology: v6e:2x2x1
jax: 0.10.0
libtpu: 0.0.40
codegen_flags: <defaults>
</compile_context>

<pallas_src>
import functools

import jax
import jax.numpy as jnp
from jax.experimental import pallas as pl
from jax.experimental.pallas import tpu as pltpu

_VMEM_BUDGET = 24 * 1024 * 1024     # per-step working-set budget (safe on all gens)
_VMEM_LIMIT = 32 * 1024 * 1024      # explicit scoped-VMEM limit (<= v7x physical)


def _round_up(n, m):
    return (n + m - 1) // m * m


# --------------------------------------------------------------------------- #
# kernel: one batch tile.  dot -> +b -> relu -> dot -> +b (store mid) -> relu
#         -> dot -> +b (store out).  All accumulation in f32 on the MXU.
# --------------------------------------------------------------------------- #
def _mlp_kernel(compute_dtype,
                x_ref, w1_ref, b1_ref, w2_ref, b2_ref, w3_ref, b3_ref,
                mid_ref, out_ref):
    h1 = jnp.dot(x_ref[...], w1_ref[...],
                 preferred_element_type=jnp.float32) + b1_ref[...]
    h1 = jnp.maximum(h1, 0.0)

    mid = jnp.dot(h1.astype(compute_dtype), w2_ref[...],
                  preferred_element_type=jnp.float32) + b2_ref[...]
    mid_ref[...] = mid.astype(mid_ref.dtype)

    h2 = jnp.maximum(mid, 0.0)
    out = jnp.dot(h2.astype(compute_dtype), w3_ref[...],
                  preferred_element_type=jnp.float32) + b3_ref[...]
    out_ref[...] = out.astype(out_ref.dtype)


# --------------------------------------------------------------------------- #
# one-time parameter preparation (outside the hot path): fold BN, cast weights.
# --------------------------------------------------------------------------- #
def prepare_params(raw, feat_d, *, compute_dtype=jnp.bfloat16):
    """Fold BatchNorms into the Linear weights (f32) and cast for the MXU."""
    w1 = raw["w1"].astype(jnp.float32)
    b1 = raw["b1"].astype(jnp.float32)
    w2 = raw["w2"].astype(jnp.float32)
    b2 = raw["b2"].astype(jnp.float32)
    w3 = raw["w3"].astype(jnp.float32)
    b3 = raw["b3"].astype(jnp.float32)

    dim_in, h1 = w1.shape
    has_lower = dim_in > feat_d          # stage > 0: input BN is applied

    if has_lower:
        s0 = raw["bn2_scale"].astype(jnp.float32)   # (1, dim_in)
        t0 = raw["bn2_shift"].astype(jnp.float32)
        b1 = t0 @ w1 + b1                            # uses original w1
        w1 = w1 * s0.reshape(dim_in, 1)

    s1 = raw["bn1_scale"].astype(jnp.float32)        # (1, h1)
    t1 = raw["bn1_shift"].astype(jnp.float32)
    b2 = t1 @ w2 + b2                                # uses original w2
    w2 = w2 * s1.reshape(h1, 1)

    return {
        "w1": w1.astype(compute_dtype), "b1": b1,
        "w2": w2.astype(compute_dtype), "b2": b2,
        "w3": w3.astype(compute_dtype), "b3": b3,
        "has_lower": has_lower,
        "feat_d": feat_d,
        "compute_dtype": compute_dtype,
    }


# --------------------------------------------------------------------------- #
# forward
# --------------------------------------------------------------------------- #
def mlp_2hidlay_forward(x, lower_f, prepared, *, out_dtype=None, tb=None):
    """Pallas implementation of MLP_2HidLay.forward (eval mode).

    x:        (B, feat_d) float32
    lower_f:  (B, hidden) float32 or None
    prepared: output of prepare_params (BN folded, weights cast)
    out_dtype: dtype of the stored outputs (default: x.dtype; bf16 recommended)
    tb:       batch tile size (rows per grid step); None -> auto
    returns:  (middle_feat (B, h2), out (B, 206))
    """
    compute_dtype = prepared["compute_dtype"]
    w1, b1 = prepared["w1"], prepared["b1"]
    w2, b2 = prepared["w2"], prepared["b2"]
    w3, b3 = prepared["w3"], prepared["b3"]
    dim_in, h1 = w1.shape
    h2 = w2.shape[1]
    n_out = w3.shape[1]
    B = x.shape[0]

    if out_dtype is None:
        out_dtype = x.dtype

    # Pack the first-layer input once (one K = feat_d + hidden dot in-kernel).
    if prepared["has_lower"]:
        assert lower_f is not None, "stage > 0 model requires lower_f"
        xin = jnp.concatenate([x, lower_f], axis=1)
    else:
        xin = x
    assert xin.shape[1] == dim_in, "w1 shape must match feat_d (+ hidden)"
    xin = xin.astype(compute_dtype)

    # ---- batch tiling: >=2 grid steps when B allows (v7x dual-TC), VMEM-aware ---
    if tb is None:
        tb = min(512, max(8, _round_up(pl.cdiv(B, 2), 8)))
    tb = max(8, _round_up(tb, 8))

    cbytes = jnp.dtype(compute_dtype).itemsize
    obytes = jnp.dtype(out_dtype).itemsize

    def _vmem_bytes(tb_):
        io = 2 * tb_ * (dim_in * cbytes + (h2 + n_out) * obytes)   # double-buffered I/O
        wts = 2 * ((dim_in * h1 + h1 * h2 + h2 * n_out) * cbytes
                   + (h1 + h2 + n_out) * 4)                        # resident weights/biases
        tmp = tb_ * (h1 + h2 + n_out) * 4                          # f32 intermediates
        return io + wts + tmp

    while tb > 8 and _vmem_bytes(tb) > _VMEM_BUDGET:
        tb = max(8, _round_up(tb // 2, 8))

    Bp = _round_up(B, tb)
    if Bp != B:
        xin = jnp.pad(xin, ((0, Bp - B), (0, 0)))
    nb = Bp // tb

    # ---- specs ----
    row = lambda d: pl.BlockSpec((tb, d), lambda i: (i, 0))
    const = lambda shape: pl.BlockSpec(shape, lambda i: (0, 0))

    in_specs = [
        row(dim_in),
        const((dim_in, h1)), const((1, h1)),
        const((h1, h2)), const((1, h2)),
        const((h2, n_out)), const((1, n_out)),
    ]
    out_specs = (pl.BlockSpec((tb, h2), lambda i: (i, 0)),
                 pl.BlockSpec((tb, n_out), lambda i: (i, 0)))
    out_shape = (jax.ShapeDtypeStruct((Bp, h2), out_dtype),
                 jax.ShapeDtypeStruct((Bp, n_out), out_dtype))

    flops = 2 * Bp * (dim_in * h1 + h1 * h2 + h2 * n_out)
    bytes_accessed = int(
        Bp * dim_in * cbytes
        + (dim_in * h1 + h1 * h2 + h2 * n_out) * cbytes
        + (h1 + h2 + n_out) * 4
        + Bp * (h2 + n_out) * obytes)

    mid_p, out_p = pl.pallas_call(
        functools.partial(_mlp_kernel, compute_dtype),
        out_shape=out_shape,
        grid=(nb,),
        in_specs=in_specs,
        out_specs=out_specs,
        compiler_params=pltpu.CompilerParams(
            dimension_semantics=("parallel",),
            vmem_limit_bytes=_VMEM_LIMIT),
        cost_estimate=pl.CostEstimate(
            flops=flops, transcendentals=0, bytes_accessed=bytes_accessed),
    )(xin, w1, b1, w2, b2, w3, b3)

    if Bp != B:                      # only slice when the batch had to be padded
        mid_p, out_p = mid_p[:B], out_p[:B]
    return mid_p, out_p


# --------------------------------------------------------------------------- #
# synthetic params + pure-JAX reference (original, unfolded semantics)
# --------------------------------------------------------------------------- #
def init_params(key, dim_in, dim_hidden1, dim_hidden2, n_out=206, eps=1e-5):
    """Deterministic synthetic parameters (shapes match the PyTorch module)."""
    ks = jax.random.split(key, 14)
    u = lambda k, shape, s=0.1: jax.random.uniform(k, shape, jnp.float32, -s, s)

    # BatchNorm1d(dim_in) running stats + affine, folded to scale/shift.
    mean0 = u(ks[0], (1, dim_in))
    var0 = jax.random.uniform(ks[1], (1, dim_in), jnp.float32, 0.5, 1.5)
    gamma0 = jax.random.uniform(ks[2], (1, dim_in), jnp.float32, 0.8, 1.2)
    beta0 = u(ks[3], (1, dim_in))
    s0 = gamma0 * jax.lax.rsqrt(var0 + eps)
    t0 = beta0 - mean0 * s0

    # BatchNorm1d(dim_hidden1), folded to scale/shift.
    mean1 = u(ks[4], (1, dim_hidden1))
    var1 = jax.random.uniform(ks[5], (1, dim_hidden1), jnp.float32, 0.5, 1.5)
    gamma1 = jax.random.uniform(ks[6], (1, dim_hidden1), jnp.float32, 0.8, 1.2)
    beta1 = u(ks[7], (1, dim_hidden1))
    s1 = gamma1 * jax.lax.rsqrt(var1 + eps)
    t1 = beta1 - mean1 * s1

    return {
        "bn2_scale": s0, "bn2_shift": t0,
        "w1": u(ks[8], (dim_in, dim_hidden1)), "b1": u(ks[9], (1, dim_hidden1)),
        "bn1_scale": s1, "bn1_shift": t1,
        "w2": u(ks[10], (dim_hidden1, dim_hidden2)), "b2": u(ks[11], (1, dim_hidden2)),
        "w3": u(ks[12], (dim_hidden2, n_out)), "b3": u(ks[13], (1, n_out)),
    }


def _reference(x, lower_f, p):
    """Original (unfolded) math: BN on activations, then the three Linears."""
    if lower_f is not None:
        xin = jnp.concatenate([x, lower_f], axis=1)
        xin = xin * p["bn2_scale"] + p["bn2_shift"]
    else:
        xin = x
    h = jnp.maximum(xin @ p["w1"] + p["b1"], 0.0)
    h = h * p["bn1_scale"] + p["bn1_shift"]
    mid = h @ p["w2"] + p["b2"]
    out = jnp.maximum(mid, 0.0) @ p["w3"] + p["b3"]
    return mid, out


if __name__ == "__main__":
    key = jax.random.PRNGKey(0)
    k_x, k_lf, k_p, k_p0 = jax.random.split(key, 4)

    batch = 32
    feat_d = 16
    hidden = 32          # dim_hidden1 == dim_hidden2 (params['hidden_size'] analogue)
    n_out = 206
    dim_in = feat_d + hidden   # stage > 0 case: x concatenated with lower_f

    x = jax.random.normal(k_x, (batch, feat_d), jnp.float32)
    lower_f = jax.random.normal(k_lf, (batch, hidden), jnp.float32)
    p = init_params(k_p, dim_in, hidden, hidden, n_out=n_out)

    mid_ref, out_ref = _reference(x, lower_f, p)

    # stage > 0, f32 compute path (validates the BN-into-weight folds); tb=8 -> 4 steps.
    prep_f32 = prepare_params(p, feat_d, compute_dtype=jnp.float32)
    mid, out = jax.block_until_ready(
        mlp_2hidlay_forward(x, lower_f, prep_f32, out_dtype=jnp.float32, tb=8))
    assert mid.shape == (batch, hidden) and out.shape == (batch, n_out)
    assert jnp.allclose(mid, mid_ref, atol=2e-3, rtol=2e-3)
    assert jnp.allclose(out, out_ref, atol=2e-3, rtol=2e-3)

    # stage > 0, bf16 performance path (f32 accumulation, bf16 outputs); auto tb (2 steps).
    prep_bf16 = prepare_params(p, feat_d, compute_dtype=jnp.bfloat16)
    mid_bf, out_bf = jax.block_until_ready(
        mlp_2hidlay_forward(x, lower_f, prep_bf16, out_dtype=jnp.bfloat16))
    assert jnp.allclose(mid_bf.astype(jnp.float32), mid_ref, atol=3e-2, rtol=3e-2)
    assert jnp.allclose(out_bf.astype(jnp.float32), out_ref, atol=3e-2, rtol=3e-2)

    # stage 0 path: lower_f is None, no input BatchNorm applied.
    p0 = init_params(k_p0, feat_d, hidden, hidden, n_out=n_out)
    mid0_ref, out0_ref = _reference(x, None, p0)
    prep0 = prepare_params(p0, feat_d, compute_dtype=jnp.float32)
    mid0, out0 = jax.block_until_ready(
        mlp_2hidlay_forward(x, None, prep0, out_dtype=jnp.float32))
    assert jnp.allclose(mid0, mid0_ref, atol=2e-3, rtol=2e-3)
    assert jnp.allclose(out0, out0_ref, atol=2e-3, rtol=2e-3)

    print("KERNEL_OK")
</pallas_src>

<mosaic_0001>
module attributes {stable_mosaic.version = 11 : i64} {
  func.func @_mlp_kernel(%arg0: i32, %arg1: memref<8x48xf32, #tpu.memory_space<vmem>>, %arg2: memref<48x32xf32, #tpu.memory_space<vmem>>, %arg3: memref<1x32xf32, #tpu.memory_space<vmem>>, %arg4: memref<32x32xf32, #tpu.memory_space<vmem>>, %arg5: memref<1x32xf32, #tpu.memory_space<vmem>>, %arg6: memref<32x206xf32, #tpu.memory_space<vmem>>, %arg7: memref<1x206xf32, #tpu.memory_space<vmem>>, %arg8: memref<8x32xf32, #tpu.memory_space<vmem>>, %arg9: memref<8x206xf32, #tpu.memory_space<vmem>>) attributes {dimension_semantics = [#tpu.dimension_semantics<parallel>], iteration_bounds = array<i64: 4>, scalar_prefetch = 0 : i64, scratch_operands = 0 : i64, tpu.core_type = #tpu.core_type<tc>, window_params = [{transform_indices = @transform_0, window_bounds = array<i64: 8, 48>}, {pipeline_mode = #tpu.pipeline_mode<synchronous>, transform_indices = @transform_1, window_bounds = array<i64: 48, 32>}, {pipeline_mode = #tpu.pipeline_mode<synchronous>, transform_indices = @transform_2, window_bounds = array<i64: 1, 32>}, {pipeline_mode = #tpu.pipeline_mode<synchronous>, transform_indices = @transform_3, window_bounds = array<i64: 32, 32>}, {pipeline_mode = #tpu.pipeline_mode<synchronous>, transform_indices = @transform_4, window_bounds = array<i64: 1, 32>}, {pipeline_mode = #tpu.pipeline_mode<synchronous>, transform_indices = @transform_5, window_bounds = array<i64: 32, 206>}, {pipeline_mode = #tpu.pipeline_mode<synchronous>, transform_indices = @transform_6, window_bounds = array<i64: 1, 206>}, {transform_indices = @transform_7, window_bounds = array<i64: 8, 32>}, {transform_indices = @transform_8, window_bounds = array<i64: 8, 206>}]} {
    %c0 = arith.constant 0 : index
    %c0_0 = arith.constant 0 : index
    %0 = vector.load %arg1[%c0, %c0_0] : memref<8x48xf32, #tpu.memory_space<vmem>>, vector<8x48xf32>
    %c0_1 = arith.constant 0 : index
    %c0_2 = arith.constant 0 : index
    %1 = vector.load %arg2[%c0_1, %c0_2] : memref<48x32xf32, #tpu.memory_space<vmem>>, vector<48x32xf32>
    %cst = arith.constant dense<0.000000e+00> : vector<8x32xf32>
    %2 = tpu.matmul %0, %1, %cst {dimension_numbers = #tpu.dot_dimension_numbers<[1], [0], [0], [1], [0, 0, 1, 1], [], []>} : vector<8x48xf32>, vector<48x32xf32>, vector<8x32xf32> -> vector<8x32xf32>
    %c0_3 = arith.constant 0 : index
    %c0_4 = arith.constant 0 : index
    %3 = vector.load %arg3[%c0_3, %c0_4] : memref<1x32xf32, #tpu.memory_space<vmem>>, vector<1x32xf32>
    %4 = vector.broadcast %3 : vector<1x32xf32> to vector<8x32xf32>
    %5 = arith.addf %2, %4 : vector<8x32xf32>
    %cst_5 = arith.constant 0.000000e+00 : f32
    %6 = vector.broadcast %cst_5 : f32 to vector<8x32xf32>
    %7 = arith.maximumf %5, %6 : vector<8x32xf32>
    %c0_6 = arith.constant 0 : index
    %c0_7 = arith.constant 0 : index
    %8 = vector.load %arg4[%c0_6, %c0_7] : memref<32x32xf32, #tpu.memory_space<vmem>>, vector<32x32xf32>
    %cst_8 = arith.constant dense<0.000000e+00> : vector<8x32xf32>
    %9 = tpu.matmul %7, %8, %cst_8 {dimension_numbers = #tpu.dot_dimension_numbers<[1], [0], [0], [1], [0, 0, 1, 1], [], []>} : vector<8x32xf32>, vector<32x32xf32>, vector<8x32xf32> -> vector<8x32xf32>
    %c0_9 = arith.constant 0 : index
    %c0_10 = arith.constant 0 : index
    %10 = vector.load %arg5[%c0_9, %c0_10] : memref<1x32xf32, #tpu.memory_space<vmem>>, vector<1x32xf32>
    %11 = vector.broadcast %10 : vector<1x32xf32> to vector<8x32xf32>
    %12 = arith.addf %9, %11 : vector<8x32xf32>
    %c0_11 = arith.constant 0 : index
    %c0_12 = arith.constant 0 : index
    %13 = vector.load %arg8[%c0_11, %c0_12] : memref<8x32xf32, #tpu.memory_space<vmem>>, vector<8x32xf32>
    tpu.vector_store %arg8[%c0_11, %c0_12], %12 {strides = array<i32>} : memref<8x32xf32, #tpu.memory_space<vmem>>, vector<8x32xf32>,
    %cst_13 = arith.constant 0.000000e+00 : f32
    %14 = vector.broadcast %cst_13 : f32 to vector<8x32xf32>
    %15 = arith.maximumf %12, %14 : vector<8x32xf32>
    %c0_14 = arith.constant 0 : index
    %c0_15 = arith.constant 0 : index
    %16 = vector.load %arg6[%c0_14, %c0_15] : memref<32x206xf32, #tpu.memory_space<vmem>>, vector<32x206xf32>
    %cst_16 = arith.constant dense<0.000000e+00> : vector<8x206xf32>
    %17 = tpu.matmul %15, %16, %cst_16 {dimension_numbers = #tpu.dot_dimension_numbers<[1], [0], [0], [1], [0, 0, 1, 1], [], []>} : vector<8x32xf32>, vector<32x206xf32>, vector<8x206xf32> -> vector<8x206xf32>
    %c0_17 = arith.constant 0 : index
    %c0_18 = arith.constant 0 : index
    %18 = vector.load %arg7[%c0_17, %c0_18] : memref<1x206xf32, #tpu.memory_space<vmem>>, vector<1x206xf32>
    %19 = vector.broadcast %18 : vector<1x206xf32> to vector<8x206xf32>
    %20 = arith.addf %17, %19 : vector<8x206xf32>
    %c0_19 = arith.constant 0 : index
    %c0_20 = arith.constant 0 : index
    %21 = vector.load %arg9[%c0_19, %c0_20] : memref<8x206xf32, #tpu.memory_space<vmem>>, vector<8x206xf32>
    tpu.vector_store %arg9[%c0_19, %c0_20], %20 {strides = array<i32>} : memref<8x206xf32, #tpu.memory_space<vmem>>, vector<8x206xf32>,
    return
  }
  func.func @transform_0(%arg0: i32) -> (i32, i32) {
    %c0_i32 = arith.constant 0 : i32
    %c0_i32_0 = arith.constant 0 : i32
    return %arg0, %c0_i32 : i32, i32
  }
  func.func @transform_1(%arg0: i32) -> (i32, i32) {
    %c0_i32 = arith.constant 0 : i32
    %c0_i32_0 = arith.constant 0 : i32
    %c0_i32_1 = arith.constant 0 : i32
    return %c0_i32, %c0_i32_0 : i32, i32
  }
  func.func @transform_2(%arg0: i32) -> (i32, i32) {
    %c0_i32 = arith.constant 0 : i32
    %c0_i32_0 = arith.constant 0 : i32
    %c0_i32_1 = arith.constant 0 : i32
    return %c0_i32, %c0_i32_0 : i32, i32
  }
  func.func @transform_3(%arg0: i32) -> (i32, i32) {
    %c0_i32 = arith.constant 0 : i32
    %c0_i32_0 = arith.constant 0 : i32
    %c0_i32_1 = arith.constant 0 : i32
    return %c0_i32, %c0_i32_0 : i32, i32
  }
  func.func @transform_4(%arg0: i32) -> (i32, i32) {
    %c0_i32 = arith.constant 0 : i32
    %c0_i32_0 = arith.constant 0 : i32
    %c0_i32_1 = arith.constant 0 : i32
    return %c0_i32, %c0_i32_0 : i32, i32
  }
  func.func @transform_5(%arg0: i32) -> (i32, i32) {
    %c0_i32 = arith.constant 0 : i32
    %c0_i32_0 = arith.constant 0 : i32
    %c0_i32_1 = arith.constant 0 : i32
    return %c0_i32, %c0_i32_0 : i32, i32
  }
  func.func @transform_6(%arg0: i32) -> (i32, i32) {
    %c0_i32 = arith.constant 0 : i32
    %c0_i32_0 = arith.constant 0 : i32
    %c0_i32_1 = arith.constant 0 : i32
    return %c0_i32, %c0_i32_0 : i32, i32
  }
  func.func @transform_7(%arg0: i32) -> (i32, i32) {
    %c0_i32 = arith.constant 0 : i32
    %c0_i32_0 = arith.constant 0 : i32
    return %arg0, %c0_i32 : i32, i32
  }
  func.func @transform_8(%arg0: i32) -> (i32, i32) {
    %c0_i32 = arith.constant 0 : i32
    %c0_i32_0 = arith.constant 0 : i32
    return %arg0, %c0_i32 : i32, i32
  }
}

</mosaic_0001>

<llo_original>
// kernel: tpu_custom_call.1
$region0: #{tpu_custom_call.1}
  #allocation0 [shape = 'u32[]', space=smem, size = 0x4, offset = 0x4, fixed_abs, tag = 'smem constant byte address 0x4 - core index']
  #allocation1 [shape = 'u32[144,128]{1,0:T(1,128)}', space=vmem, size = 0x12000, scoped, tag = 'internal scratch']
  %s0 = inlined_call_operand.hbm [shape: f32[32,48], index: 0, kind: input, shape index: {}]
  %s1 = inlined_call_operand.vmem [shape: f32[48,32], index: 1, kind: input, shape index: {}]
  %s2 = inlined_call_operand.vmem [shape: f32[1,32], index: 2, kind: input, shape index: {}]
  %s3 = inlined_call_operand.hbm [shape: f32[32,32], index: 3, kind: input, shape index: {}]
  %s4 = inlined_call_operand.vmem [shape: f32[1,32], index: 4, kind: input, shape index: {}]
  %s5 = inlined_call_operand.vmem [shape: f32[32,206], index: 5, kind: input, shape index: {}]
  %s6 = inlined_call_operand.vmem [shape: f32[1,206], index: 6, kind: input, shape index: {}]
  %s7 = inlined_call_operand.hbm [shape: f32[32,32], index: 7, kind: output, shape index: {0}]
  %s8 = inlined_call_operand.hbm [shape: f32[32,206], index: 8, kind: output, shape index: {1}]
  %9 = xla_tuple %s7, %s8
  %s10 = sld [smem:[#allocation0]]
  $region77: #{tpu_custom_call.1} parent=0
    _
  %s12 = ssub.s32 1, %s10
  %s13 = scalar_select 0, %s12, %s10
  $region1: #{tpu_custom_call.1} parent=0
    #allocation2 [shape = 'u8[8192]{0}', space=vmem, size = 0x2000, scoped, tag = 'input window, operand 0']
    #allocation3 [shape = 's32[2]{0}', space=sflag, size = 0x8, scoped, tag = 'scoped memory for tpu_custom_call.1']
    #allocation4 [shape = 's32[2]{0}', space=sflag, size = 0x8, scoped, tag = 'scoped memory for tpu_custom_call.1']
    #allocation5 [shape = 'u8[16384]{0}', space=vmem, size = 0x4000, scoped, tag = 'input window, operand 3, single buffered']
    #allocation6 [shape = 's32[1]{0}', space=sflag, size = 0x4, scoped, tag = 'scoped memory for tpu_custom_call.1']
    #allocation7 [shape = 'u8[8192]{0}', space=vmem, size = 0x2000, scoped, tag = 'output window, operand 0']
    #allocation8 [shape = 'u8[16384]{0}', space=vmem, size = 0x4000, scoped, tag = 'output window, operand 1']
    #allocation9 [shape = 's32[2]{0}', space=sflag, size = 0x8, scoped, tag = 'scoped memory for tpu_custom_call.1']
    %14 = vsyncpa [#allocation3], 0
    %s15 = scalar_lea.sflag [#allocation3], 1
    %16 = vsyncpa %s15, 0
    %17 = vsyncpa [#allocation6], 0
    %18 = vsyncpa [#allocation4], 0
    %s19 = scalar_lea.sflag [#allocation4], 1
    %20 = vsyncpa %s19, 0
    %21 = vsyncpa [#allocation9], 0
    %s22 = scalar_lea.sflag [#allocation9], 1
    %23 = vsyncpa %s22, 0
    loop: start=0, step=1, limit=6
    $region2: #{tpu_custom_call.1} parent=1 // loop_pre_header
      _
    $region3: #{tpu_custom_call.1} parent=1 // loop_header
      %s25 = sphi 0, %s29
      %p26 = scmp.ge.s32.totalorder %s25, 6
      %s35 = sphi 0, %s37
      %s38 = sphi 0, %s35
      %s39 = sphi 0, %s38
      %s55 = sphi 0, %s39
      %s59 = sphi 0, %s59
      %s61 = sphi 0, %s59
      %s62 = sphi 0, %s61
      %s76 = sphi 0, %s62
      %s80 = sphi 0, %s80
      %s82 = sphi 0, %s80
      %s83 = sphi 0, %s82
      %s97 = sphi 0, %s83
      %s101 = sphi 0, %s101
      %s103 = sphi 0, %s101
      %s104 = sphi 0, %s103
      %s118 = sphi 0, %s104
      %s122 = sphi 0, %s122
      %s124 = sphi 0, %s122
      %s125 = sphi 0, %s124
      %s139 = sphi 0, %s125
      %s143 = sphi 0, %s143
      %s145 = sphi 0, %s143
      %s146 = sphi 0, %s145
      %s160 = sphi 0, %s146
      %s164 = sphi 0, %s164
      %s166 = sphi 0, %s164
      %s167 = sphi 0, %s166
      %s181 = sphi 0, %s167
      %s187 = sphi 0, %s189
      %s190 = sphi 0, %s187
      %s191 = sphi 0, %s190
      %s207 = sphi 0, %s191
      %s213 = sphi 0, %s215
      %s216 = sphi 0, %s213
      %s217 = sphi 0, %s216
      %s233 = sphi 0, %s217
    $region4: #{tpu_custom_call.1} parent=1 // loop_header_branch
      %28 = sbr.rel (%p26) target = $region8
    $region5: #{tpu_custom_call.1} parent=1 // loop_body
      %s30 = ssub.s32 %s25, 1
      %s31 = ssub.s32 %s25, 2
      %s32 = sadd.s32 %s25, 1
      %s33 = ssub.s32 %s25, %s32
      %p34 = scmp.eq.s32.totalorder %s33, 0
      %s36 = sadd.s32 %s35, 1
      %s37 = scalar_select %p34, %s35, %s36
      %p40 = pneg %p34
      %p41 = scmp.eq.s32.totalorder %s25, 3
      %p42 = por %p40, %p41
      %p43 = scmp.ne.s32.totalorder %s35, %s38
      %p44 = scmp.eq.s32.totalorder %s25, 0
      %p45 = por %p43, %p44
      %p46 = scmp.ne.s32.totalorder %s35, %s38
      %p47 = scmp.eq.s32.totalorder %s30, 3
      %p48 = por %p46, %p47
      %p49 = scmp.ne.s32.totalorder %s38, %s39
      %p50 = scmp.eq.s32.totalorder %s30, 0
      %p51 = por %p49, %p50
      %p52 = scmp.ne.s32.totalorder %s38, %s39
      %p53 = scmp.eq.s32.totalorder %s31, 3
      %p54 = por %p52, %p53
      %p56 = scmp.ne.s32.totalorder %s39, %s55
      %p57 = scmp.eq.s32.totalorder %s31, 0
      %p58 = por %p56, %p57
      %s60 = sadd.s32 %s59, 1
      %p63 = scmp.eq.s32.totalorder %s25, 3
      %p64 = scmp.ne.s32.totalorder %s59, %s61
      %p65 = scmp.eq.s32.totalorder %s25, 0
      %p66 = por %p64, %p65
      %p67 = scmp.ne.s32.totalorder %s59, %s61
      %p68 = scmp.eq.s32.totalorder %s30, 3
      %p69 = por %p67, %p68
      %p70 = scmp.ne.s32.totalorder %s61, %s62
      %p71 = scmp.eq.s32.totalorder %s30, 0
      %p72 = por %p70, %p71
      %p73 = scmp.ne.s32.totalorder %s61, %s62
      %p74 = scmp.eq.s32.totalorder %s31, 3
      %p75 = por %p73, %p74
      %p77 = scmp.ne.s32.totalorder %s62, %s76
      %p78 = scmp.eq.s32.totalorder %s31, 0
      %p79 = por %p77, %p78
      %s81 = sadd.s32 %s80, 1
      %p84 = scmp.eq.s32.totalorder %s25, 3
      %p85 = scmp.ne.s32.totalorder %s80, %s82
      %p86 = scmp.eq.s32.totalorder %s25, 0
      %p87 = por %p85, %p86
      %p88 = scmp.ne.s32.totalorder %s80, %s82
      %p89 = scmp.eq.s32.totalorder %s30, 3
      %p90 = por %p88, %p89
      %p91 = scmp.ne.s32.totalorder %s82, %s83
      %p92 = scmp.eq.s32.totalorder %s30, 0
      %p93 = por %p91, %p92
      %p94 = scmp.ne.s32.totalorder %s82, %s83
      %p95 = scmp.eq.s32.totalorder %s31, 3
      %p96 = por %p94, %p95
      %p98 = scmp.ne.s32.totalorder %s83, %s97
      %p99 = scmp.eq.s32.totalorder %s31, 0
      %p100 = por %p98, %p99
      %s102 = sadd.s32 %s101, 1
      %p105 = scmp.eq.s32.totalorder %s25, 3
      %p106 = scmp.ne.s32.totalorder %s101, %s103
      %p107 = scmp.eq.s32.totalorder %s25, 0
      %p108 = por %p106, %p107
      %p109 = scmp.ne.s32.totalorder %s101, %s103
      %p110 = scmp.eq.s32.totalorder %s30, 3
      %p111 = por %p109, %p110
      %p112 = scmp.ne.s32.totalorder %s103, %s104
      %p113 = scmp.eq.s32.totalorder %s30, 0
      %p114 = por %p112, %p113
      %p115 = scmp.ne.s32.totalorder %s103, %s104
      %p116 = scmp.eq.s32.totalorder %s31, 3
      %p117 = por %p115, %p116
      %p119 = scmp.ne.s32.totalorder %s104, %s118
      %p120 = scmp.eq.s32.totalorder %s31, 0
      %p121 = por %p119, %p120
      %s123 = sadd.s32 %s122, 1
      %p126 = scmp.eq.s32.totalorder %s25, 3
      %p127 = scmp.ne.s32.totalorder %s122, %s124
      %p128 = scmp.eq.s32.totalorder %s25, 0
      %p129 = por %p127, %p128
      %p130 = scmp.ne.s32.totalorder %s122, %s124
      %p131 = scmp.eq.s32.totalorder %s30, 3
      %p132 = por %p130, %p131
      %p133 = scmp.ne.s32.totalorder %s124, %s125
      %p134 = scmp.eq.s32.totalorder %s30, 0
      %p135 = por %p133, %p134
      %p136 = scmp.ne.s32.totalorder %s124, %s125
      %p137 = scmp.eq.s32.totalorder %s31, 3
      %p138 = por %p136, %p137
      %p140 = scmp.ne.s32.totalorder %s125, %s139
      %p141 = scmp.eq.s32.totalorder %s31, 0
      %p142 = por %p140, %p141
      %s144 = sadd.s32 %s143, 1
      %p147 = scmp.eq.s32.totalorder %s25, 3
      %p148 = scmp.ne.s32.totalorder %s143, %s145
      %p149 = scmp.eq.s32.totalorder %s25, 0
      %p150 = por %p148, %p149
      %p151 = scmp.ne.s32.totalorder %s143, %s145
      %p152 = scmp.eq.s32.totalorder %s30, 3
      %p153 = por %p151, %p152
      %p154 = scmp.ne.s32.totalorder %s145, %s146
      %p155 = scmp.eq.s32.totalorder %s30, 0
      %p156 = por %p154, %p155
      %p157 = scmp.ne.s32.totalorder %s145, %s146
      %p158 = scmp.eq.s32.totalorder %s31, 3
      %p159 = por %p157, %p158
      %p161 = scmp.ne.s32.totalorder %s146, %s160
      %p162 = scmp.eq.s32.totalorder %s31, 0
      %p163 = por %p161, %p162
      %s165 = sadd.s32 %s164, 1
      %p168 = scmp.eq.s32.totalorder %s25, 3
      %p169 = scmp.ne.s32.totalorder %s164, %s166
      %p170 = scmp.eq.s32.totalorder %s25, 0
      %p171 = por %p169, %p170
      %p172 = scmp.ne.s32.totalorder %s164, %s166
      %p173 = scmp.eq.s32.totalorder %s30, 3
      %p174 = por %p172, %p173
      %p175 = scmp.ne.s32.totalorder %s166, %s167
      %p176 = scmp.eq.s32.totalorder %s30, 0
      %p177 = por %p175, %p176
      %p178 = scmp.ne.s32.totalorder %s166, %s167
      %p179 = scmp.eq.s32.totalorder %s31, 3
      %p180 = por %p178, %p179
      %p182 = scmp.ne.s32.totalorder %s167, %s181
      %p183 = scmp.eq.s32.totalorder %s31, 0
      %p184 = por %p182, %p183
      %s185 = ssub.s32 %s25, %s32
      %p186 = scmp.eq.s32.totalorder %s185, 0
      %s188 = sadd.s32 %s187, 1
      %s189 = scalar_select %p186, %s187, %s188
      %p192 = pneg %p186
      %p193 = scmp.eq.s32.totalorder %s25, 3
      %p194 = por %p192, %p193
      %p195 = scmp.ne.s32.totalorder %s187, %s190
      %p196 = scmp.eq.s32.totalorder %s25, 0
      %p197 = por %p195, %p196
      %p198 = scmp.ne.s32.totalorder %s187, %s190
      %p199 = scmp.eq.s32.totalorder %s30, 3
      %p200 = por %p198, %p199
      %p201 = scmp.ne.s32.totalorder %s190, %s191
      %p202 = scmp.eq.s32.totalorder %s30, 0
      %p203 = por %p201, %p202
      %p204 = scmp.ne.s32.totalorder %s190, %s191
      %p205 = scmp.eq.s32.totalorder %s31, 3
      %p206 = por %p204, %p205
      %p208 = scmp.ne.s32.totalorder %s191, %s207
      %p209 = scmp.eq.s32.totalorder %s31, 0
      %p210 = por %p208, %p209
      %s211 = ssub.s32 %s25, %s32
      %p212 = scmp.eq.s32.totalorder %s211, 0
      %s214 = sadd.s32 %s213, 1
      %s215 = scalar_select %p212, %s213, %s214
      %p218 = pneg %p212
      %p219 = scmp.eq.s32.totalorder %s25, 3
      %p220 = por %p218, %p219
      %p221 = scmp.ne.s32.totalorder %s213, %s216
      %p222 = scmp.eq.s32.totalorder %s25, 0
      %p223 = por %p221, %p222
      %p224 = scmp.ne.s32.totalorder %s213, %s216
      %p225 = scmp.eq.s32.totalorder %s30, 3
      %p226 = por %p224, %p225
      %p227 = scmp.ne.s32.totalorder %s216, %s217
      %p228 = scmp.eq.s32.totalorder %s30, 0
      %p229 = por %p227, %p228
      %p230 = scmp.ne.s32.totalorder %s216, %s217
      %p231 = scmp.eq.s32.totalorder %s31, 3
      %p232 = por %p230, %p231
      %p234 = scmp.ne.s32.totalorder %s217, %s233
      %p235 = scmp.eq.s32.totalorder %s31, 0
      %p236 = por %p234, %p235
      %p237 = scmp.le.s32.totalorder 1, %s25
      %p238 = scmp.lt.s32.totalorder %s25, 5
      %p239 = pnand %p237, %p238
      %p240 = pneg %p239
      // Predicated region
      $region9: #{tpu_custom_call.1} parent=5 // pred_check
        _
      $region10: #{tpu_custom_call.1} parent=5 // pred_check_branch
        %242 = sbr.rel (%p239) target = $region12
      $region11: #{tpu_custom_call.1} parent=5 // pred_region
        %s243 = ssub.s32 %s25, 1
        // Predicated region
        $region13: #{tpu_custom_call.1} parent=11 // pred_check
          %p244 = pneg %p72
        $region14: #{tpu_custom_call.1} parent=11 // pred_check_branch
          %246 = sbr.rel (%p244) target = $region16
        $region15: #{tpu_custom_call.1} parent=11 // pred_region
          _
        $region16: #{tpu_custom_call.1} parent=11 // pred_fallthru
          _
        // Predicated region
        $region17: #{tpu_custom_call.1} parent=11 // pred_check
          %p247 = pneg %p93
        $region18: #{tpu_custom_call.1} parent=11 // pred_check_branch
          %249 = sbr.rel (%p247) target = $region20
        $region19: #{tpu_custom_call.1} parent=11 // pred_region
          _
        $region20: #{tpu_custom_call.1} parent=11 // pred_fallthru
          _
        // Predicated region
        $region21: #{tpu_custom_call.1} parent=11 // pred_check
          %p250 = pneg %p114
        $region22: #{tpu_custom_call.1} parent=11 // pred_check_branch
          %252 = sbr.rel (%p250) target = $region24
        $region23: #{tpu_custom_call.1} parent=11 // pred_region
          %s254 = ssub.s32 512, 512
          %255 = vsyncadd [#allocation6], %s254
          %s256 = sshll.u32 [#allocation5], 4
          %s257 = int_to_ptr.vmem [resolvable:$true] %s256
          %262 = dma.hbm_to_vmem [thread:$0]  %s3, 512, %s257, [#allocation6], 128, 128, 8
        $region24: #{tpu_custom_call.1} parent=11 // pred_fallthru
          _
        // Predicated region
        $region25: #{tpu_custom_call.1} parent=11 // pred_check
          %p263 = pneg %p135
        $region26: #{tpu_custom_call.1} parent=11 // pred_check_branch
          %265 = sbr.rel (%p263) target = $region28
        $region27: #{tpu_custom_call.1} parent=11 // pred_region
          _
        $region28: #{tpu_custom_call.1} parent=11 // pred_fallthru
          _
        // Predicated region
        $region29: #{tpu_custom_call.1} parent=11 // pred_check
          %p266 = pneg %p156
        $region30: #{tpu_custom_call.1} parent=11 // pred_check_branch
          %268 = sbr.rel (%p266) target = $region32
        $region31: #{tpu_custom_call.1} parent=11 // pred_region
          _
        $region32: #{tpu_custom_call.1} parent=11 // pred_fallthru
          _
        // Predicated region
        $region33: #{tpu_custom_call.1} parent=11 // pred_check
          %p269 = pneg %p177
        $region34: #{tpu_custom_call.1} parent=11 // pred_check_branch
          %271 = sbr.rel (%p269) target = $region36
        $region35: #{tpu_custom_call.1} parent=11 // pred_region
          _
        $region36: #{tpu_custom_call.1} parent=11 // pred_fallthru
          _
      $region12: #{tpu_custom_call.1} parent=5 // pred_fallthru
        _
      %p272 = scmp.lt.s32.totalorder %s25, 4
      // Predicated region
      $region37: #{tpu_custom_call.1} parent=5 // pred_check
        %p273 = pneg %p272
      $region38: #{tpu_custom_call.1} parent=5 // pred_check_branch
        %275 = sbr.rel (%p273) target = $region40
      $region39: #{tpu_custom_call.1} parent=5 // pred_region
        // Predicated region
        $region41: #{tpu_custom_call.1} parent=39 // pred_check
          %p276 = pneg %p45
        $region42: #{tpu_custom_call.1} parent=39 // pred_check_branch
          %278 = sbr.rel (%p276) target = $region44
        $region43: #{tpu_custom_call.1} parent=39 // pred_region
          %s279 = sand.u32 %s35, 1
          %s280 = scalar_lea.sflag [#allocation3], %s279
          %s281 = sand.u32 %s35, 1
          %s282 = smul.addr %s281, 8
          %s283 = scalar_lea.vmem [#allocation2], %s282
          %s285 = ssub.s32 128, 128
          %286 = vsyncadd %s280, %s285
          %s287 = smul.addr %s25, 128
          %s288 = scalar_lea.hbm %s0, %s287
          %s290 = sshll.u32 %s283, 4
          %s291 = int_to_ptr.vmem [resolvable:$true] %s290
          %293 = dma.hbm_to_vmem [thread:$0]  %s288, 128, %s291, %s280
        $region44: #{tpu_custom_call.1} parent=39 // pred_fallthru
          _
      $region40: #{tpu_custom_call.1} parent=5 // pred_fallthru
        _
      %p294 = scmp.le.s32.totalorder 1, %s25
      %p295 = scmp.lt.s32.totalorder %s25, 5
      %p296 = pnand %p294, %p295
      %p297 = pneg %p296
      // Predicated region
      $region45: #{tpu_custom_call.1} parent=5 // pred_check
        _
      $region46: #{tpu_custom_call.1} parent=5 // pred_check_branch
        %299 = sbr.rel (%p296) target = $region48
      $region47: #{tpu_custom_call.1} parent=5 // pred_region
        %s300 = ssub.s32 %s25, 1
        %s301 = sand.u32 %s38, 1
        %s302 = scalar_lea.sflag [#allocation3], %s301
        %s303 = sand.u32 %s38, 1
        %s304 = smul.addr %s303, 8
        %s305 = scalar_lea.vmem [#allocation2], %s304
        // Predicated region
        $region49: #{tpu_custom_call.1} parent=47 // pred_check
          %p306 = pneg %p51
        $region50: #{tpu_custom_call.1} parent=47 // pred_check_branch
          %308 = sbr.rel (%p306) target = $region52
        $region51: #{tpu_custom_call.1} parent=47 // pred_region
          %309 = dma.done %s302, 128
        $region52: #{tpu_custom_call.1} parent=47 // pred_fallthru
          _
        // Predicated region
        $region53: #{tpu_custom_call.1} parent=47 // pred_check
          %p310 = pneg %p114
        $region54: #{tpu_custom_call.1} parent=47 // pred_check_branch
          %312 = sbr.rel (%p310) target = $region56
        $region55: #{tpu_custom_call.1} parent=47 // pred_region
          %313 = dma.done [#allocation6], 512
        $region56: #{tpu_custom_call.1} parent=47 // pred_fallthru
          _
        %s314 = sand.u32 %s38, 1
        %s315 = scalar_lea.sflag [#allocation3], %s314
        %s316 = sand.u32 %s38, 1
        %s317 = smul.addr %s316, 8
        %s318 = scalar_lea.vmem [#allocation2], %s317
        %p319 = pneg %p51
        %p320 = pneg %p48
        %p321 = pneg %p72
        %p322 = pneg %p69
        %p323 = pneg %p93
        %p324 = pneg %p90
        %p325 = pneg %p114
        %p326 = pneg %p111
        %p327 = pneg %p135
        %p328 = pneg %p132
        %p329 = pneg %p156
        %p330 = pneg %p153
        %p331 = pneg %p177
        %p332 = pneg %p174
        %p333 = pneg %p203
        %p334 = pneg %p200
        %s335 = sand.u32 %s190, 1
        %s336 = scalar_lea.sflag [#allocation4], %s335
        %s337 = sand.u32 %s190, 1
        %s338 = smul.addr %s337, 8
        %s339 = scalar_lea.vmem [#allocation7], %s338
        %p340 = pneg %p229
        %p341 = pneg %p226
        %s342 = sand.u32 %s216, 1
        %s343 = scalar_lea.sflag [#allocation9], %s342
        %s344 = sand.u32 %s216, 1
        %s345 = smul.addr %s344, 16
        %s346 = scalar_lea.vmem [#allocation8], %s345
        %v347 = vld [vmem:[%s305] sm:$0xff]
        %v348 = vld [vmem:[%s1] sm:$0xff]
        %v349 = vld [vmem:[%s1 + $0x8] sm:$0xff]
        %v350 = vld [vmem:[%s1 + $0x10] sm:$0xff]
        %v351 = vld [vmem:[%s1 + $0x18] sm:$0xff]
        %v352 = vld [vmem:[%s1 + $0x20] sm:$0xff]
        %v353 = vld [vmem:[%s1 + $0x28] sm:$0xff]
        %v354 = vld [vmem:[%s2] sm:$0x1]
        %v356 = vlaneseq
        %v357 = vshrl.u32 %v356, 7
        %v358 = vsub.s32 0, %v357
        %v359 = vrot.slane %v354, %v358
        %vm361 = vcmask 392192
        %v363 = vsel %vm361, %v347, 0
        %365 = vmatprep.subr.mxu0 0.0
        %366 = vmatpush1.msra.mxu0 0.0
        %367 = vmatprep.subr.mxu0 0.0
        %368 = vmatpush1.msra.mxu0 0.0
        %369 = vmatprep.subr.mxu0 0.0
        %370 = vmatpush1.msra.mxu0 0.0
        %371 = vmatprep.subr.mxu0 0.0
        %372 = vmatpush1.msra.mxu0 0.0
        %373 = vmatprep.subr.mxu0 0.0
        %374 = vmatpush1.msra.mxu0 0.0
        %375 = vmatprep.subr.mxu0 0.0
        %376 = vmatpush1.msra.mxu0 0.0
        %377 = vmatprep.subr.mxu0 0.0
        %378 = vmatpush1.msra.mxu0 0.0
        %379 = vmatprep.subr.mxu0 0.0
        %380 = vmatpush1.msra.mxu0 0.0
        %381 = vmatprep.subr.mxu0 0.0
        %382 = vmatpush1.msra.mxu0 0.0
        %383 = vmatprep.subr.mxu0 0.0
        %384 = vmatpush1.msra.mxu0 0.0
        %385 = vmatprep.subr.mxu0 0.0
        %386 = vmatpush1.msra.mxu0 %v353
        %387 = vmatprep.subr.mxu0 0.0
        %388 = vmatpush1.msra.mxu0 %v352
        %389 = vmatprep.subr.mxu0 0.0
        %390 = vmatpush1.msra.mxu0 %v351
        %391 = vmatprep.subr.mxu0 0.0
        %392 = vmatpush1.msra.mxu0 %v350
        %393 = vmatprep.subr.mxu0 0.0
        %394 = vmatpush1.msra.mxu0 %v349
        %395 = vmatprep.subr.mxu0 0.0
        %396 = vmatpush1.msra.mxu0 %v348
        %397 = vmatprep.subr.mxu0 0.0
        %398 = vmatpush2.msra.mxu0 0.0
        %399 = vmatprep.subr.mxu0 0.0
        %400 = vmatpush2.msra.mxu0 0.0
        %401 = vmatprep.subr.mxu0 0.0
        %402 = vmatpush2.msra.mxu0 0.0
        %403 = vmatprep.subr.mxu0 0.0
        %404 = vmatpush2.msra.mxu0 0.0
        %405 = vmatprep.subr.mxu0 0.0
        %406 = vmatpush2.msra.mxu0 0.0
        %407 = vmatprep.subr.mxu0 0.0
        %408 = vmatpush2.msra.mxu0 0.0
        %409 = vmatprep.subr.mxu0 0.0
        %410 = vmatpush2.msra.mxu0 0.0
        %411 = vmatprep.subr.mxu0 0.0
        %412 = vmatpush2.msra.mxu0 0.0
        %413 = vmatprep.subr.mxu0 0.0
        %414 = vmatpush2.msra.mxu0 0.0
        %415 = vmatprep.subr.mxu0 0.0
        %416 = vmatpush2.msra.mxu0 0.0
        %417 = vmatprep.subr.mxu0 0.0
        %418 = vmatpush2.msra.mxu0 0.0
        %419 = vmatprep.subr.mxu0 0.0
        %420 = vmatpush2.msra.mxu0 0.0
        %421 = vmatprep.subr.mxu0 0.0
        %422 = vmatpush2.msra.mxu0 0.0
        %423 = vmatprep.subr.mxu0 0.0
        %424 = vmatpush2.msra.mxu0 0.0
        %425 = vmatprep.subr.mxu0 0.0
        %426 = vmatpush2.msra.mxu0 0.0
        %427 = vmatprep.subr.mxu0 0.0
        %428 = vmatpush2.msra.mxu0 0.0
        %429 = vmatprep.mubr.f32.mxu0 0.0
        %430 = vmatmul.mubr.f32.gmra.mxu0 %v363
        %v431 = vpop.f32.mrf.mxu0
        %v432 = vadd.f32 %v359, %v431
        %v433 = vpop.f32.mrf.mxu0
        %434 = vdwg.mxu0
        %v435 = vmax.f32 %v432, 0.0
        %v436 = vld [vmem:[#allocation5] sm:$0xff]
        %v437 = vld [vmem:[#allocation5 + $0x8] sm:$0xff]
        %v438 = vld [vmem:[#allocation5 + $0x10] sm:$0xff]
        %v439 = vld [vmem:[#allocation5 + $0x18] sm:$0xff]
        %v440 = vld [vmem:[%s4] sm:$0x1]
        %v442 = vlaneseq
        %v443 = vshrl.u32 %v442, 7
        %v444 = vsub.s32 0, %v443
        %v445 = vrot.slane %v440, %v444
        %vm447 = vcmask 261120
        %v449 = vsel %vm447, %v435, 0
        %451 = vmatprep.subr.mxu0 0.0
        %452 = vmatpush1.msra.mxu0 0.0
        %453 = vmatprep.subr.mxu0 0.0
        %454 = vmatpush1.msra.mxu0 0.0
        %455 = vmatprep.subr.mxu0 0.0
        %456 = vmatpush1.msra.mxu0 0.0
        %457 = vmatprep.subr.mxu0 0.0
        %458 = vmatpush1.msra.mxu0 0.0
        %459 = vmatprep.subr.mxu0 0.0
        %460 = vmatpush1.msra.mxu0 0.0
        %461 = vmatprep.subr.mxu0 0.0
        %462 = vmatpush1.msra.mxu0 0.0
        %463 = vmatprep.subr.mxu0 0.0
        %464 = vmatpush1.msra.mxu0 0.0
        %465 = vmatprep.subr.mxu0 0.0
        %466 = vmatpush1.msra.mxu0 0.0
        %467 = vmatprep.subr.mxu0 0.0
        %468 = vmatpush1.msra.mxu0 0.0
        %469 = vmatprep.subr.mxu0 0.0
        %470 = vmatpush1.msra.mxu0 0.0
        %471 = vmatprep.subr.mxu0 0.0
        %472 = vmatpush1.msra.mxu0 0.0
        %473 = vmatprep.subr.mxu0 0.0
        %474 = vmatpush1.msra.mxu0 0.0
        %475 = vmatprep.subr.mxu0 0.0
        %476 = vmatpush1.msra.mxu0 %v439
        %477 = vmatprep.subr.mxu0 0.0
        %478 = vmatpush1.msra.mxu0 %v438
        %479 = vmatprep.subr.mxu0 0.0
        %480 = vmatpush1.msra.mxu0 %v437
        %481 = vmatprep.subr.mxu0 0.0
        %482 = vmatpush1.msra.mxu0 %v436
        %483 = vmatprep.subr.mxu0 0.0
        %484 = vmatpush2.msra.mxu0 0.0
        %485 = vmatprep.subr.mxu0 0.0
        %486 = vmatpush2.msra.mxu0 0.0
        %487 = vmatprep.subr.mxu0 0.0
        %488 = vmatpush2.msra.mxu0 0.0
        %489 = vmatprep.subr.mxu0 0.0
        %490 = vmatpush2.msra.mxu0 0.0
        %491 = vmatprep.subr.mxu0 0.0
        %492 = vmatpush2.msra.mxu0 0.0
        %493 = vmatprep.subr.mxu0 0.0
        %494 = vmatpush2.msra.mxu0 0.0
        %495 = vmatprep.subr.mxu0 0.0
        %496 = vmatpush2.msra.mxu0 0.0
        %497 = vmatprep.subr.mxu0 0.0
        %498 = vmatpush2.msra.mxu0 0.0
        %499 = vmatprep.subr.mxu0 0.0
        %500 = vmatpush2.msra.mxu0 0.0
        %501 = vmatprep.subr.mxu0 0.0
        %502 = vmatpush2.msra.mxu0 0.0
        %503 = vmatprep.subr.mxu0 0.0
        %504 = vmatpush2.msra.mxu0 0.0
        %505 = vmatprep.subr.mxu0 0.0
        %506 = vmatpush2.msra.mxu0 0.0
        %507 = vmatprep.subr.mxu0 0.0
        %508 = vmatpush2.msra.mxu0 0.0
        %509 = vmatprep.subr.mxu0 0.0
        %510 = vmatpush2.msra.mxu0 0.0
        %511 = vmatprep.subr.mxu0 0.0
        %512 = vmatpush2.msra.mxu0 0.0
        %513 = vmatprep.subr.mxu0 0.0
        %514 = vmatpush2.msra.mxu0 0.0
        %515 = vmatprep.mubr.f32.mxu0 0.0
        %516 = vmatmul.mubr.f32.gmra.mxu0 %v449
        %v517 = vpop.f32.mrf.mxu0
        %v518 = vadd.f32 %v445, %v517
        %v519 = vpop.f32.mrf.mxu0
        %520 = vdwg.mxu0
        %521 = vst.msk [vmem:[%s339] sm:$0xff] %vm447, %v518
        %v522 = vmax.f32 %v518, 0.0
        %v523 = vld [vmem:[%s5] sm:$0xff]
        %v524 = vld [vmem:[%s5 + $0x8] sm:$0xff]
        %v525 = vld [vmem:[%s5 + $0x10] sm:$0xff]
        %v526 = vld [vmem:[%s5 + $0x18] sm:$0xff]
        %v527 = vld [vmem:[%s5 + $0x20] sm:$0xff]
        %v528 = vld [vmem:[%s5 + $0x28] sm:$0xff]
        %v529 = vld [vmem:[%s5 + $0x30] sm:$0xff]
        %v530 = vld [vmem:[%s5 + $0x38] sm:$0xff]
        %v531 = vld [vmem:[%s6] sm:$0x3]
        %v533 = vlaneseq
        %v534 = vshrl.u32 %v533, 7
        %v535 = vsub.s32 0, %v534
        %v536 = vrot.slane %v531, %v535
        %v537 = vlaneseq
        %v538 = vshrl.u32 %v537, 7
        %v539 = vsub.s32 1, %v538
        %v540 = vrot.slane %v531, %v539
        %v544 = vsel %vm447, %v522, 0
        %546 = vmatprep.subr.mxu0 0.0
        %547 = vmatpush1.msra.mxu0 0.0
        %548 = vmatprep.subr.mxu0 0.0
        %549 = vmatpush1.msra.mxu0 0.0
        %550 = vmatprep.subr.mxu0 0.0
        %551 = vmatpush1.msra.mxu0 0.0
        %552 = vmatprep.subr.mxu0 0.0
        %553 = vmatpush1.msra.mxu0 0.0
        %554 = vmatprep.subr.mxu0 0.0
        %555 = vmatpush1.msra.mxu0 0.0
        %556 = vmatprep.subr.mxu0 0.0
        %557 = vmatpush1.msra.mxu0 0.0
        %558 = vmatprep.subr.mxu0 0.0
        %559 = vmatpush1.msra.mxu0 0.0
        %560 = vmatprep.subr.mxu0 0.0
        %561 = vmatpush1.msra.mxu0 0.0
        %562 = vmatprep.subr.mxu0 0.0
        %563 = vmatpush1.msra.mxu0 0.0
        %564 = vmatprep.subr.mxu0 0.0
        %565 = vmatpush1.msra.mxu0 0.0
        %566 = vmatprep.subr.mxu0 0.0
        %567 = vmatpush1.msra.mxu0 0.0
        %568 = vmatprep.subr.mxu0 0.0
        %569 = vmatpush1.msra.mxu0 0.0
        %570 = vmatprep.subr.mxu0 %v530
        %571 = vmatpush1.msra.mxu0 %v529
        %572 = vmatprep.subr.mxu0 %v528
        %573 = vmatpush1.msra.mxu0 %v527
        %574 = vmatprep.subr.mxu0 %v526
        %575 = vmatpush1.msra.mxu0 %v525
        %576 = vmatprep.subr.mxu0 %v524
        %577 = vmatpush1.msra.mxu0 %v523
        %578 = vmatprep.subr.mxu0 0.0
        %579 = vmatpush2.msra.mxu0 0.0
        %580 = vmatprep.subr.mxu0 0.0
        %581 = vmatpush2.msra.mxu0 0.0
        %582 = vmatprep.subr.mxu0 0.0
        %583 = vmatpush2.msra.mxu0 0.0
        %584 = vmatprep.subr.mxu0 0.0
        %585 = vmatpush2.msra.mxu0 0.0
        %586 = vmatprep.subr.mxu0 0.0
        %587 = vmatpush2.msra.mxu0 0.0
        %588 = vmatprep.subr.mxu0 0.0
        %589 = vmatpush2.msra.mxu0 0.0
        %590 = vmatprep.subr.mxu0 0.0
        %591 = vmatpush2.msra.mxu0 0.0
        %592 = vmatprep.subr.mxu0 0.0
        %593 = vmatpush2.msra.mxu0 0.0
        %594 = vmatprep.subr.mxu0 0.0
        %595 = vmatpush2.msra.mxu0 0.0
        %596 = vmatprep.subr.mxu0 0.0
        %597 = vmatpush2.msra.mxu0 0.0
        %598 = vmatprep.subr.mxu0 0.0
        %599 = vmatpush2.msra.mxu0 0.0
        %600 = vmatprep.subr.mxu0 0.0
        %601 = vmatpush2.msra.mxu0 0.0
        %602 = vmatprep.subr.mxu0 0.0
        %603 = vmatpush2.msra.mxu0 0.0
        %604 = vmatprep.subr.mxu0 0.0
        %605 = vmatpush2.msra.mxu0 0.0
        %606 = vmatprep.subr.mxu0 0.0
        %607 = vmatpush2.msra.mxu0 0.0
        %608 = vmatprep.subr.mxu0 0.0
        %609 = vmatpush2.msra.mxu0 0.0
        %610 = vmatprep.mubr.f32.mxu0 0.0
        %611 = vmatmul.mubr.f32.gmra.mxu0 %v544
        %v612 = vpop.f32.mrf.mxu0
        %v613 = vadd.f32 %v536, %v612
        %v614 = vpop.f32.mrf.mxu0
        %v615 = vadd.f32 %v540, %v614
        %616 = vdwg.mxu0
        %617 = vst [vmem:[%s346] sm:$0xff] %v613
        %vm618 = vcmask 637952
        %619 = vst.msk [vmem:[%s346 + $0x8] sm:$0xff] %vm618, %v615
        %s620 = sand.u32 %s190, 1
        %s621 = scalar_lea.sflag [#allocation4], %s620
        %s622 = sand.u32 %s190, 1
        %s623 = smul.addr %s622, 8
        %s624 = scalar_lea.vmem [#allocation7], %s623
        %s625 = sand.u32 %s216, 1
        %s626 = scalar_lea.sflag [#allocation9], %s625
        %s627 = sand.u32 %s216, 1
        %s628 = smul.addr %s627, 16
        %s629 = scalar_lea.vmem [#allocation8], %s628
        // Predicated region
        $region57: #{tpu_custom_call.1} parent=47 // pred_check
          %p630 = pneg %p200
        $region58: #{tpu_custom_call.1} parent=47 // pred_check_branch
          %632 = sbr.rel (%p630) target = $region60
        $region59: #{tpu_custom_call.1} parent=47 // pred_region
          %s634 = ssub.s32 128, 128
          %635 = vsyncadd %s621, %s634
          %s636 = smul.addr %s30, 128
          %s637 = scalar_lea.hbm %s7, %s636
          %s639 = sshll.u32 %s624, 4
          %s640 = int_to_ptr.vmem [resolvable:$true] %s639
          %642 = dma.vmem_to_hbm [thread:$0]  %s640, 128, %s637, %s621
        $region60: #{tpu_custom_call.1} parent=47 // pred_fallthru
          _
        // Predicated region
        $region61: #{tpu_custom_call.1} parent=47 // pred_check
          %p643 = pneg %p226
        $region62: #{tpu_custom_call.1} parent=47 // pred_check_branch
          %645 = sbr.rel (%p643) target = $region64
        $region63: #{tpu_custom_call.1} parent=47 // pred_region
          %s647 = ssub.s32 256, 256
          %648 = vsyncadd %s626, %s647
          %s649 = smul.addr %s30, 2
          %s650 = smul.addr %s649, 128
          %s651 = scalar_lea.hbm %s8, %s650
          %s653 = sshll.u32 %s629, 4
          %s654 = int_to_ptr.vmem [resolvable:$true] %s653
          %656 = dma.vmem_to_hbm [thread:$0]  %s654, 256, %s651, %s626
        $region64: #{tpu_custom_call.1} parent=47 // pred_fallthru
          _
      $region48: #{tpu_custom_call.1} parent=5 // pred_fallthru
        _
      %p657 = scmp.le.s32.totalorder 2, %s25
      // Predicated region
      $region65: #{tpu_custom_call.1} parent=5 // pred_check
        %p658 = pneg %p657
      $region66: #{tpu_custom_call.1} parent=5 // pred_check_branch
        %660 = sbr.rel (%p658) target = $region68
      $region67: #{tpu_custom_call.1} parent=5 // pred_region
        %s661 = ssub.s32 %s25, 2
        // Predicated region
        $region69: #{tpu_custom_call.1} parent=67 // pred_check
          %p662 = pneg %p206
        $region70: #{tpu_custom_call.1} parent=67 // pred_check_branch
          %664 = sbr.rel (%p662) target = $region72
        $region71: #{tpu_custom_call.1} parent=67 // pred_region
          %s665 = sand.u32 %s191, 1
          %s666 = scalar_lea.sflag [#allocation4], %s665
          %s667 = sand.u32 %s191, 1
          %s668 = smul.addr %s667, 8
          %s669 = scalar_lea.vmem [#allocation7], %s668
          %670 = dma.done %s666, 128
        $region72: #{tpu_custom_call.1} parent=67 // pred_fallthru
          _
        // Predicated region
        $region73: #{tpu_custom_call.1} parent=67 // pred_check
          %p671 = pneg %p232
        $region74: #{tpu_custom_call.1} parent=67 // pred_check_branch
          %673 = sbr.rel (%p671) target = $region76
        $region75: #{tpu_custom_call.1} parent=67 // pred_region
          %s674 = sand.u32 %s217, 1
          %s675 = scalar_lea.sflag [#allocation9], %s674
          %s676 = sand.u32 %s217, 1
          %s677 = smul.addr %s676, 16
          %s678 = scalar_lea.vmem [#allocation8], %s677
          %679 = dma.done %s675, 256
        $region76: #{tpu_custom_call.1} parent=67 // pred_fallthru
          _
      $region68: #{tpu_custom_call.1} parent=5 // pred_fallthru
        _
    $region6: #{tpu_custom_call.1} parent=1 // loop_footer
      %s29 = sadd.s32 1, %s25
    $region7: #{tpu_custom_call.1} parent=1 // loop_footer_branch
      %24 = sbr.rel target = $region3
    $region8: #{tpu_custom_call.1} parent=1 // loop_exit
      _
    %680 = vsyncpa [#allocation3], 1
    %s681 = scalar_lea.sflag [#allocation3], 1
    %682 = vsyncpa %s681, 1
    %683 = vsyncpa [#allocation6], 1
    %684 = vsyncpa [#allocation4], 1
    %s685 = scalar_lea.sflag [#allocation4], 1
    %686 = vsyncpa %s685, 1
    %687 = vsyncpa [#allocation9], 1
    %s688 = scalar_lea.sflag [#allocation9], 1
    %689 = vsyncpa %s688, 1

</llo_original>
